<compile_context>
chip_gen: v7x
topology: tpu7x:2x2x1
jax: 0.10.0
libtpu: 0.0.40
codegen_flags: <defaults>
</compile_context>

<pallas_src>
import functools

import jax
import jax.numpy as jnp
from jax import lax
from jax.experimental import pallas as pl
from jax.experimental.pallas import tpu as pltpu


def _round_up(x: int, m: int) -> int:
    return ((x + m - 1) // m) * m


def _focal_loss_kernel(x_ref, t_ref, o_ref, *, gamma: float, n_rows: int, tile_n: int):
    i = pl.program_id(0)

    x = x_ref[...].astype(jnp.float32)      # (TILE_N, C) logits (bf16 passes through HBM)
    t = t_ref[...]                          # (TILE_N, 1) int32 class indices

    # numerically stable softmax pieces
    m = jnp.max(x, axis=-1, keepdims=True)                          # (TILE_N, 1)
    e = jnp.exp(x - m)                                              # (TILE_N, C)
    sumexp = jnp.sum(e, axis=-1, keepdims=True)                     # (TILE_N, 1)
    lse = m + jnp.log(sumexp)                                       # (TILE_N, 1)

    # gather at target class via one-hot mask (no dynamic gather on TPU)
    col = lax.broadcasted_iota(jnp.int32, x.shape, 1)               # (TILE_N, C)
    onehot = (col == t).astype(jnp.float32)                         # (TILE_N, C)
    logit_t = jnp.sum(x * onehot, axis=-1, keepdims=True)           # (TILE_N, 1)
    e_t = jnp.sum(e * onehot, axis=-1, keepdims=True)               # (TILE_N, 1)

    ce = lse - logit_t                                              # = -log p_t
    # pt = exp(-ce) without a second exp: reuse e = exp(x - m)
    pt = e_t * pl.reciprocal(sumexp, approx=False)                  # exact reciprocal
    one_minus_pt = jnp.maximum(1.0 - pt, 0.0)                       # clamp ulp overshoot

    # static (trace-time) gamma specialization: integer gammas -> plain multiplies
    g = float(gamma)
    if g == 0.0:
        mod = jnp.ones_like(one_minus_pt)
    elif g.is_integer() and 0.0 < g <= 8.0:
        mod = one_minus_pt
        for _ in range(int(g) - 1):
            mod = mod * one_minus_pt
    else:
        mod = one_minus_pt ** g                                     # log+exp fallback

    focal = mod * ce                                                # (TILE_N, 1)

    # mask rows of the (possibly padded) last tile
    row = lax.broadcasted_iota(jnp.int32, focal.shape, 0) + i * tile_n
    focal = jnp.where(row < n_rows, focal, 0.0)

    partial = jnp.sum(focal)
    # lane-dense partial-sum slab (full vreg, unmasked store); wrapper reads [i, 0, 0]
    o_ref[...] = jnp.full(o_ref.shape, partial, dtype=jnp.float32)


def _choose_tile_n(n: int, c: int, vmem_budget_bytes: int = 8 * 1024 * 1024) -> int:
    # 2 pipeline buffers of (tile_n, c) f32 logits + (tile_n, 1->128 padded) int32 targets
    per_row = c * 4 * 2 + 128 * 4 * 2
    t = max(8, min(512, (vmem_budget_bytes // per_row) // 8 * 8))
    return min(t, _round_up(n, 8))


def focal_loss(inputs, targets, gamma: float = 1.0, alpha=None, tile_n: int | None = None):
    """inputs: (N, C) float logits; targets: (N,) int class indices. Returns scalar mean loss."""
    # TODO(synk): per-class `alpha` weighting (F.cross_entropy weight=) not wired in;
    # default module config has alpha=None so forward semantics match exactly.
    assert alpha is None, "alpha weighting not implemented"
    n, c = inputs.shape

    if tile_n is None:
        tile_n = _choose_tile_n(n, c)
    assert tile_n % 8 == 0, "tile_n must be a multiple of 8 (sublane constraint)"
    num_tiles = pl.cdiv(n, tile_n)

    t2d = targets.astype(jnp.int32).reshape(n, 1)

    kernel = functools.partial(
        _focal_loss_kernel, gamma=float(gamma), n_rows=n, tile_n=tile_n
    )

    partials = pl.pallas_call(
        kernel,
        out_shape=jax.ShapeDtypeStruct((num_tiles, 8, 128), jnp.float32),
        grid=(num_tiles,),
        in_specs=[
            pl.BlockSpec((tile_n, c), lambda i: (i, 0)),
            pl.BlockSpec((tile_n, 1), lambda i: (i, 0)),
        ],
        out_specs=pl.BlockSpec((1, 8, 128), lambda i: (i, 0, 0)),
        compiler_params=pltpu.CompilerParams(
            dimension_semantics=("parallel",),
            vmem_limit_bytes=64 * 1024 * 1024,
        ),
    )(inputs, t2d)

    # tiny epilogue in XLA: sum per-tile partials, multiply by 1/N (true N, not padded)
    return jnp.sum(partials[:, 0, 0]) * jnp.float32(1.0 / n)


def _focal_loss_ref(inputs, targets, gamma=1.0):
    x = inputs.astype(jnp.float32)
    logp = jax.nn.log_softmax(x, axis=-1)
    ce = -jnp.take_along_axis(logp, targets[:, None].astype(jnp.int32), axis=-1)[:, 0]
    pt = jnp.exp(-ce)
    return jnp.mean(((1.0 - pt) ** gamma) * ce)


if __name__ == "__main__":
    key = jax.random.PRNGKey(0)
    k1, k2, k3, k4 = jax.random.split(key, 4)

    # small shapes matching the module's forward: (batch, num_classes) logits + int targets
    N, C = 8, 32
    logits = jax.random.normal(k1, (N, C), dtype=jnp.float32)
    targets = jax.random.randint(k2, (N,), 0, C, dtype=jnp.int32)

    loss = focal_loss(logits, targets, gamma=1.0)
    jax.block_until_ready(loss)
    ref = _focal_loss_ref(logits, targets, gamma=1.0)
    assert jnp.allclose(loss, ref, atol=1e-5, rtol=1e-4), (loss, ref)

    # second check: multi-tile grid with a ragged (masked) last tile and gamma=2
    N2, C2 = 24, 160
    logits2 = jax.random.normal(k3, (N2, C2), dtype=jnp.float32)
    targets2 = jax.random.randint(k4, (N2,), 0, C2, dtype=jnp.int32)

    loss2 = focal_loss(logits2, targets2, gamma=2.0, tile_n=16)  # 2 tiles, last one padded
    jax.block_until_ready(loss2)
    ref2 = _focal_loss_ref(logits2, targets2, gamma=2.0)
    assert jnp.allclose(loss2, ref2, atol=1e-5, rtol=1e-4), (loss2, ref2)

    print("KERNEL_OK")
</pallas_src>

<mosaic_0001>
module attributes {stable_mosaic.version = 11 : i64} {
  func.func @_focal_loss_kernel(%arg0: i32, %arg1: memref<8x32xf32, #tpu.memory_space<vmem>>, %arg2: memref<8x1xi32, #tpu.memory_space<vmem>>, %arg3: memref<1x8x128xf32, #tpu.memory_space<vmem>>) attributes {dimension_semantics = [#tpu.dimension_semantics<parallel>], iteration_bounds = array<i64: 1>, scalar_prefetch = 0 : i64, scratch_operands = 0 : i64, tpu.core_type = #tpu.core_type<tc>, window_params = [{transform_indices = @transform_0, window_bounds = array<i64: 8, 32>}, {transform_indices = @transform_1, window_bounds = array<i64: 8, 1>}, {transform_indices = @transform_2, window_bounds = array<i64: 1, 8, 128>}]} {
    %c0 = arith.constant 0 : index
    %c0_0 = arith.constant 0 : index
    %0 = vector.load %arg1[%c0, %c0_0] : memref<8x32xf32, #tpu.memory_space<vmem>>, vector<8x32xf32>
    %c0_1 = arith.constant 0 : index
    %c0_2 = arith.constant 0 : index
    %1 = vector.load %arg2[%c0_1, %c0_2] : memref<8x1xi32, #tpu.memory_space<vmem>>, vector<8x1xi32>
    %cst = arith.constant dense<0xFF800000> : vector<8xf32>
    %2 = vector.multi_reduction <maximumf>, %0, %cst [1] : vector<8x32xf32> to vector<8xf32>
    %3 = vector.shape_cast %2 : vector<8xf32> to vector<8x1xf32>
    %4 = vector.broadcast %3 : vector<8x1xf32> to vector<8x32xf32>
    %5 = arith.subf %0, %4 : vector<8x32xf32>
    %6 = math.exp %5 : vector<8x32xf32>
    %cst_3 = arith.constant dense<0.000000e+00> : vector<8xf32>
    %7 = vector.multi_reduction <add>, %6, %cst_3 [1] : vector<8x32xf32> to vector<8xf32>
    %8 = vector.shape_cast %7 : vector<8xf32> to vector<8x1xf32>
    %9 = math.log %8 : vector<8x1xf32>
    %10 = arith.addf %3, %9 : vector<8x1xf32>
    %11 = tpu.iota {dimensions = array<i32: 1>} : vector<8x32xi32>
    %12 = vector.broadcast %1 : vector<8x1xi32> to vector<8x32xi32>
    %13 = arith.cmpi eq, %11, %12 : vector<8x32xi32>
    %14 = arith.extui %13 : vector<8x32xi1> to vector<8x32xi32>
    %15 = arith.sitofp %14 : vector<8x32xi32> to vector<8x32xf32>
    %16 = arith.mulf %0, %15 : vector<8x32xf32>
    %cst_4 = arith.constant dense<0.000000e+00> : vector<8xf32>
    %17 = vector.multi_reduction <add>, %16, %cst_4 [1] : vector<8x32xf32> to vector<8xf32>
    %18 = vector.shape_cast %17 : vector<8xf32> to vector<8x1xf32>
    %19 = arith.mulf %6, %15 : vector<8x32xf32>
    %cst_5 = arith.constant dense<0.000000e+00> : vector<8xf32>
    %20 = vector.multi_reduction <add>, %19, %cst_5 [1] : vector<8x32xf32> to vector<8xf32>
    %21 = vector.shape_cast %20 : vector<8xf32> to vector<8x1xf32>
    %22 = arith.subf %10, %18 : vector<8x1xf32>
    %23 = tpu.reciprocal %8 : vector<8x1xf32> -> vector<8x1xf32>
    %24 = arith.mulf %21, %23 : vector<8x1xf32>
    %cst_6 = arith.constant 1.000000e+00 : f32
    %25 = vector.broadcast %cst_6 : f32 to vector<8x1xf32>
    %26 = arith.subf %25, %24 : vector<8x1xf32>
    %cst_7 = arith.constant 0.000000e+00 : f32
    %27 = vector.broadcast %cst_7 : f32 to vector<8x1xf32>
    %28 = arith.maximumf %26, %27 : vector<8x1xf32>
    %29 = arith.mulf %28, %22 : vector<8x1xf32>
    %30 = tpu.iota {dimensions = array<i32: 0>} : vector<8x1xi32>
    %c8_i32 = arith.constant 8 : i32
    %31 = arith.muli %arg0, %c8_i32 : i32
    %32 = vector.broadcast %31 : i32 to vector<8x1xi32>
    %33 = arith.addi %30, %32 : vector<8x1xi32>
    %c8_i32_8 = arith.constant 8 : i32
    %34 = vector.broadcast %c8_i32_8 : i32 to vector<8x1xi32>
    %35 = arith.cmpi slt, %33, %34 : vector<8x1xi32>
    %cst_9 = arith.constant 0.000000e+00 : f32
    %36 = vector.broadcast %cst_9 : f32 to vector<8x1xf32>
    %37 = arith.select %35, %29, %36 : vector<8x1xi1>, vector<8x1xf32>
    %38 = vector.shape_cast %37 : vector<8x1xf32> to vector<1x8x1xf32>
    %cst_10 = arith.constant dense<0.000000e+00> : vector<1xf32>
    %39 = vector.multi_reduction <add>, %38, %cst_10 [1, 2] : vector<1x8x1xf32> to vector<1xf32>
    %40 = vector.shape_cast %39 : vector<1xf32> to vector<1x1x1xf32>
    %41 = vector.extract %40[0, 0, 0] : f32 from vector<1x1x1xf32>
    %42 = vector.broadcast %41 : f32 to vector<1x8x128xf32>
    %c0_11 = arith.constant 0 : index
    %c0_12 = arith.constant 0 : index
    %c0_13 = arith.constant 0 : index
    %43 = vector.load %arg3[%c0_11, %c0_12, %c0_13] : memref<1x8x128xf32, #tpu.memory_space<vmem>>, vector<1x8x128xf32>
    tpu.vector_store %arg3[%c0_11, %c0_12, %c0_13], %42 {strides = array<i32>} : memref<1x8x128xf32, #tpu.memory_space<vmem>>, vector<1x8x128xf32>,
    return
  }
  func.func @transform_0(%arg0: i32) -> (i32, i32) {
    %c0_i32 = arith.constant 0 : i32
    %c0_i32_0 = arith.constant 0 : i32
    return %arg0, %c0_i32 : i32, i32
  }
  func.func @transform_1(%arg0: i32) -> (i32, i32) {
    %c0_i32 = arith.constant 0 : i32
    %c0_i32_0 = arith.constant 0 : i32
    return %arg0, %c0_i32 : i32, i32
  }
  func.func @transform_2(%arg0: i32) -> (i32, i32, i32) {
    %c0_i32 = arith.constant 0 : i32
    %c0_i32_0 = arith.constant 0 : i32
    %c0_i32_1 = arith.constant 0 : i32
    return %arg0, %c0_i32, %c0_i32_0 : i32, i32, i32
  }
}

</mosaic_0001>

<llo_original>
// kernel: tpu_custom_call.1
$region0: #{tpu_custom_call.1}
  #allocation0 [shape = 'u32[]', space=smem, size = 0x4, offset = 0x4, fixed_abs, tag = 'smem constant byte address 0x4 - core index']
  #allocation1 [shape = 'u32[144,128]{1,0:T(1,128)}', space=vmem, size = 0x12000, scoped, tag = 'internal scratch']
  %s0 = inlined_call_operand.hbm [shape: f32[8,32], index: 0, kind: input, shape index: {}]
  %s1 = inlined_call_operand.hbm [shape: s32[8,1], index: 1, kind: input, shape index: {}]
  %s2 = inlined_call_operand.hbm [shape: f32[1,8,128], index: 2, kind: output, shape index: {}]
  %s3 = sld [smem:[#allocation0]]
  $region26: #{tpu_custom_call.1} parent=0
    _
  %s5 = ssub.s32 1, %s3
  %s6 = scalar_select 0, %s5, %s3
  $region1: #{tpu_custom_call.1} parent=0
    #allocation2 [shape = 'u8[4096]{0}', space=vmem, size = 0x1000, scoped, tag = 'input window, operand 0, single buffered']
    #allocation3 [shape = 's32[1]{0}', space=sflag, size = 0x4, scoped, tag = 'scoped memory for tpu_custom_call.1']
    #allocation4 [shape = 's32[1]{0}', space=sflag, size = 0x4, scoped, tag = 'scoped memory for tpu_custom_call.1']
    #allocation5 [shape = 'u8[4096]{0}', space=vmem, size = 0x1000, scoped, tag = 'input window, operand 1, single buffered']
    #allocation6 [shape = 's32[1]{0}', space=sflag, size = 0x4, scoped, tag = 'scoped memory for tpu_custom_call.1']
    #allocation7 [shape = 'u8[4096]{0}', space=vmem, size = 0x1000, scoped, tag = 'output window, operand 0, single buffered']
    %7 = vsyncpa [#allocation3], 0
    %8 = vsyncpa [#allocation6], 0
    %9 = vsyncpa [#allocation4], 0
    // Predicated region
    $region2: #{tpu_custom_call.1} parent=1 // pred_check
      _
    $region3: #{tpu_custom_call.1} parent=1 // pred_check_branch
      %11 = sbr.rel (0) target = $region5
    $region4: #{tpu_custom_call.1} parent=1 // pred_region
      %s13 = ssub.s32 128, 128
      %14 = vsyncadd [#allocation3], %s13
      %s16 = sshll.u32 [#allocation2], 4
      %s17 = int_to_ptr.vmem [resolvable:$true] %s16
      %19 = dma.hbm_to_vmem [thread:$0]  %s0, 128, %s17, [#allocation3]
    $region5: #{tpu_custom_call.1} parent=1 // pred_fallthru
      _
    // Predicated region
    $region6: #{tpu_custom_call.1} parent=1 // pred_check
      _
    $region7: #{tpu_custom_call.1} parent=1 // pred_check_branch
      %21 = sbr.rel (0) target = $region9
    $region8: #{tpu_custom_call.1} parent=1 // pred_region
      %s23 = ssub.s32 128, 128
      %24 = vsyncadd [#allocation6], %s23
      %s26 = sshll.u32 [#allocation5], 4
      %s27 = int_to_ptr.vmem [resolvable:$true] %s26
      %29 = dma.hbm_to_vmem [thread:$0]  %s1, 128, %s27, [#allocation6]
    $region9: #{tpu_custom_call.1} parent=1 // pred_fallthru
      _
    // Predicated region
    $region10: #{tpu_custom_call.1} parent=1 // pred_check
      _
    $region11: #{tpu_custom_call.1} parent=1 // pred_check_branch
      %31 = sbr.rel (0) target = $region13
    $region12: #{tpu_custom_call.1} parent=1 // pred_region
      %32 = dma.done [#allocation3], 128
    $region13: #{tpu_custom_call.1} parent=1 // pred_fallthru
      _
    // Predicated region
    $region14: #{tpu_custom_call.1} parent=1 // pred_check
      _
    $region15: #{tpu_custom_call.1} parent=1 // pred_check_branch
      %34 = sbr.rel (0) target = $region17
    $region16: #{tpu_custom_call.1} parent=1 // pred_region
      %35 = dma.done [#allocation6], 128
    $region17: #{tpu_custom_call.1} parent=1 // pred_fallthru
      _
    %v36 = vld [vmem:[#allocation2] sm:$0xff]
    %v37 = vld [vmem:[#allocation5] sm:$0xff]
    %vm38 = vcmask 261120
    %v39 = vsel %vm38, %v36, -inf
    %40 = vmax.xlane.f32.xlu0 %v39
    %v41 = vpop.xlane.xlu0 %40
    %v42 = vsub.f32 %v36, %v41
    %v43 = vmul.f32 %v42, 1.442695
    %v44 = vpow.pop %v43
    %v45 = vsel %vm38, %v44, 0.0
    %46 = vadd.xlane.f32.xlu0 %v45
    %v47 = vpop.xlane.xlu0 %46
    %v48 = vlog2.pop %v47
    %v49 = vmul.f32 %v48, 0.6931472
    %v50 = vadd.f32 %v41, %v49
    %v51 = vlaneseq
    %v52 = vand.u32 %v51, 127
    %53 = vset.pattern.permute.xlu0 0
    %54 = vperm.xlu0 %53, %v37
    %v55 = vpop.permute.xlu0 %54
    %vm56 = vcmp.eq.s32.totalorder %v52, %v55
    %v57 = vsel %vm56, 1, 0
    %v58 = vcvt.s32.f32 %v57
    %v59 = vmul.f32 %v36, %v58
    %v60 = vsel %vm38, %v59, 0.0
    %61 = vadd.xlane.f32.xlu0 %v60
    %v62 = vpop.xlane.xlu0 %61
    %v63 = vmul.f32 %v44, %v58
    %v64 = vsel %vm38, %v63, 0.0
    %65 = vadd.xlane.f32.xlu0 %v64
    %v66 = vpop.xlane.xlu0 %65
    %v67 = vsub.f32 %v50, %v62
    %v68 = vrcp.pop %v47
    %v69 = vmul.f32 %v66, %v68
    %v70 = vsub.f32 1.0, %v69
    %v71 = vmax.f32 %v70, 0.0
    %v72 = vmul.f32 %v71, %v67
    %v73 = vlaneseq
    %v74 = vshrl.u32 %v73, 7
    %s75 = smul.u32 0, 8
    %v76 = vstv %s75
    %v77 = vadd.s32 %v74, %v76
    %vm78 = vcmp.lt.s32.totalorder %v77, 8
    %v79 = vsel %vm78, %v72, 0.0
    %vm80 = vcmask 7168
    %v81 = vsel %vm80, %v79, 0.0
    %82 = vadd.xlane.f32.xlu0 %v81
    %v83 = vpop.xlane.xlu0 %82
    %v84 = vrot.slane %v83, 4
    %v85 = vadd.f32 %v83, %v84
    %v86 = vrot.slane %v85, 2
    %v87 = vadd.f32 %v85, %v86
    %v88 = vrot.slane %v87, 1
    %v89 = vadd.f32 %v87, %v88
    %s90 = vtos %v89
    %v91 = vstv %s90
    %92 = vst [vmem:[#allocation7] sm:$0xff] %v91
    // Predicated region
    $region18: #{tpu_custom_call.1} parent=1 // pred_check
      _
    $region19: #{tpu_custom_call.1} parent=1 // pred_check_branch
      %94 = sbr.rel (0) target = $region21
    $region20: #{tpu_custom_call.1} parent=1 // pred_region
      %s96 = ssub.s32 128, 128
      %97 = vsyncadd [#allocation4], %s96
      %s99 = sshll.u32 [#allocation7], 4
      %s100 = int_to_ptr.vmem [resolvable:$true] %s99
      %102 = dma.vmem_to_hbm [thread:$0]  %s100, 128, %s2, [#allocation4]
    $region21: #{tpu_custom_call.1} parent=1 // pred_fallthru
      _
    // Predicated region
    $region22: #{tpu_custom_call.1} parent=1 // pred_check
      _
    $region23: #{tpu_custom_call.1} parent=1 // pred_check_branch
      %104 = sbr.rel (0) target = $region25
    $region24: #{tpu_custom_call.1} parent=1 // pred_region
      %105 = dma.done [#allocation4], 128
    $region25: #{tpu_custom_call.1} parent=1 // pred_fallthru
      _
    %106 = vsyncpa [#allocation3], 1
    %107 = vsyncpa [#allocation6], 1
    %108 = vsyncpa [#allocation4], 1

</llo_original>
